<compile_context>
chip_gen: v7x
topology: tpu7x:2x2x1
jax: 0.10.0
libtpu: 0.0.40
codegen_flags: <defaults>
</compile_context>

<pallas_src>
import functools

import numpy as np
import jax
import jax.numpy as jnp
from jax import lax
from jax.experimental import pallas as pl
from jax.experimental.pallas import tpu as pltpu


def _basic_block_kernel(offs, slot, use_packed, mxu_dtype,
                        x_ref, w1_ref, w2_ref, m_ref, o_ref):
    # x_ref : (C, L)        L = Nb*HW; channels on sublanes, flattened spatial on lanes
    # w*_ref: (C, 9*slot)   packed 3x3 weights (tap-major, Cin zero-padded to `slot`), bf16
    # m_ref : (9, L)        f32 {0,1} boundary-validity masks for the 9 taps (resident)
    # o_ref : (C, L)
    C, L = x_ref.shape
    x = x_ref[...].astype(jnp.float32)
    masks = m_ref[...]                                   # (9, L) f32, loaded once

    zpad = None if slot == C else jnp.zeros((slot - C, L), jnp.float32)

    def pad_c(a):  # zero-pad channels up to `slot` (matches padded weight columns)
        return a if zpad is None else jnp.concatenate([a, zpad], axis=0)

    def conv(xp, w_ref):
        # Build the 9 shifted+masked taps; roll uses the XLU slot, masking the VPU.
        taps = []
        for k, off in enumerate(offs):
            shifted = xp if off == 0 else pltpu.roll(xp, shift=(-off) % L, axis=1)
            taps.append(shifted * masks[k:k + 1, :])
        if use_packed:
            # Tiny C: one (C, 9*slot) @ (9*slot, L) MXU matmul, bf16 inputs, f32 acc.
            patch = jnp.concatenate(taps, axis=0).astype(mxu_dtype)
            return jnp.dot(w_ref[...], patch, preferred_element_type=jnp.float32)
        # Large C: accumulate 9 per-tap matmuls (K = slot) -> no 9x patch in VMEM.
        acc = None
        for k, tap in enumerate(taps):
            part = jnp.dot(w_ref[:, k * slot:(k + 1) * slot],
                           tap.astype(mxu_dtype),
                           preferred_element_type=jnp.float32)
            acc = part if acc is None else acc + part
        return acc

    h = jnp.maximum(conv(pad_c(x), w1_ref), 0.0)         # conv1 + ReLU (stays in VMEM)
    out = conv(pad_c(h), w2_ref) + x                     # conv2 + residual (f32)
    o_ref[...] = jnp.maximum(out, 0.0).astype(o_ref.dtype)


def _pack_weight(w_oihw, slot, dtype):
    # (Cout, Cin, 3, 3) -> (Cout, 9*slot); column index = (ky*3+kx)*slot + cin
    cout, cin, kh, kw = w_oihw.shape
    w = jnp.transpose(w_oihw, (0, 2, 3, 1)).reshape(cout, kh * kw, cin)
    if slot > cin:
        w = jnp.pad(w, ((0, 0), (0, 0), (0, slot - cin)))
    return w.reshape(cout, kh * kw * slot).astype(dtype)


def _tap_offsets_and_masks(H, W, images_per_step):
    """Static per-lane-position validity masks for the 9 taps (computed once, host-side)."""
    HW = H * W
    p = np.arange(HW)
    row, col = p // W, p % W
    offs, masks = [], []
    for dy in (-1, 0, 1):
        for dx in (-1, 0, 1):
            offs.append(dy * W + dx)
            m = np.ones(HW, dtype=bool)
            if dy == -1:
                m &= row >= 1
            elif dy == 1:
                m &= row <= H - 2
            if dx == -1:
                m &= col >= 1
            elif dx == 1:
                m &= col <= W - 2
            masks.append(m)
    mask_np = np.stack(masks).astype(np.float32)                   # (9, HW)
    mask_np = np.tile(mask_np, (1, images_per_step))               # (9, Nb*HW)
    return tuple(offs), mask_np


def basic_block_34_forward(x_nchw, w1_oihw, w2_oihw, *, images_per_step=None,
                           mxu_dtype=jnp.bfloat16):
    """Forward of BasicBlock_34 with stride=1, downsample=None (module defaults).

    x_nchw:  (N, C, H, W) float32   (PyTorch layout)
    w*_oihw: (C, C, 3, 3) float32   (PyTorch conv weight layout, bias=False)
    returns  (N, C, H, W) float32
    """
    N, C, H, W = x_nchw.shape
    HW = H * W
    slot = ((C + 7) // 8) * 8
    K = 9 * slot
    use_packed = C < 32   # keep big-K patch packing only for tiny channel counts

    if images_per_step is None:
        # Smallest batch-fold that makes the lane axis dense (>=128); this keeps
        # >=2 grid steps (v7x megacore) whenever the per-image HW is already dense.
        divisors = [d for d in range(1, N + 1) if N % d == 0]
        images_per_step = next((d for d in divisors if d * HW >= 128), N)
    assert N % images_per_step == 0
    Nb = images_per_step
    steps = N // Nb
    L = Nb * HW

    offs, mask_np = _tap_offsets_and_masks(H, W, Nb)
    mask_arr = jnp.asarray(mask_np)                                # (9, L) f32, resident

    w1 = _pack_weight(w1_oihw, slot, mxu_dtype)
    w2 = _pack_weight(w2_oihw, slot, mxu_dtype)

    if Nb == 1:
        x_in = x_nchw.reshape(N, C, HW)                            # free reshape
    else:
        # fold Nb images into the lane axis (wrapper-side layout plumbing)
        x_in = (x_nchw.reshape(steps, Nb, C, HW)
                .transpose(0, 2, 1, 3).reshape(steps, C, L))

    kernel = functools.partial(_basic_block_kernel, offs, slot, use_packed, mxu_dtype)
    out = pl.pallas_call(
        kernel,
        out_shape=jax.ShapeDtypeStruct((steps, C, L), x_nchw.dtype),
        grid=(steps,),
        in_specs=[
            pl.BlockSpec((None, C, L), lambda n: (n, 0, 0)),       # activations
            pl.BlockSpec((C, K), lambda n: (0, 0)),                # conv1 weights (resident)
            pl.BlockSpec((C, K), lambda n: (0, 0)),                # conv2 weights (resident)
            pl.BlockSpec((9, L), lambda n: (0, 0)),                # tap masks   (resident)
        ],
        out_specs=pl.BlockSpec((None, C, L), lambda n: (n, 0, 0)),
        compiler_params=pltpu.CompilerParams(
            dimension_semantics=("parallel",)),
    )(x_in, w1, w2, mask_arr)

    if Nb == 1:
        return out.reshape(N, C, H, W)
    return (out.reshape(steps, C, Nb, HW)
            .transpose(0, 2, 1, 3).reshape(N, C, H, W))


def _reference_forward(x_nchw, w1, w2):
    dn = lax.conv_dimension_numbers(x_nchw.shape, w1.shape, ("NCHW", "OIHW", "NCHW"))
    out = lax.conv_general_dilated(x_nchw, w1, (1, 1), ((1, 1), (1, 1)),
                                   dimension_numbers=dn)
    out = jnp.maximum(out, 0.0)
    out = lax.conv_general_dilated(out, w2, (1, 1), ((1, 1), (1, 1)),
                                   dimension_numbers=dn)
    out = out + x_nchw
    return jnp.maximum(out, 0.0)


if __name__ == "__main__":
    key = jax.random.PRNGKey(0)
    k_x, k_w1, k_w2 = jax.random.split(key, 3)

    N, C, H, W = 2, 4, 16, 16            # inplanes = planes = 4 (module defaults)
    x = jax.random.normal(k_x, (N, C, H, W), jnp.float32)
    w1 = jax.random.normal(k_w1, (C, C, 3, 3), jnp.float32) * 0.1
    w2 = jax.random.normal(k_w2, (C, C, 3, 3), jnp.float32) * 0.1

    fwd = jax.jit(basic_block_34_forward)
    out = jax.block_until_ready(fwd(x, w1, w2))

    ref = jax.block_until_ready(_reference_forward(x, w1, w2))
    assert out.shape == (N, C, H, W)
    # bf16 MXU inputs (f32 accumulation): loosened tolerance vs f32 reference.
    assert jnp.allclose(out, ref, atol=2e-2, rtol=2e-2), "mismatch vs reference conv"

    print("KERNEL_OK")
</pallas_src>

<mosaic_0001>
module attributes {stable_mosaic.version = 11 : i64} {
  func.func @_basic_block_kernel(%arg0: i32, %arg1: memref<1x4x256xf32, #tpu.memory_space<vmem>>, %arg2: memref<4x72xbf16, #tpu.memory_space<vmem>>, %arg3: memref<4x72xbf16, #tpu.memory_space<vmem>>, %arg4: memref<9x256xf32, #tpu.memory_space<vmem>>, %arg5: memref<1x4x256xf32, #tpu.memory_space<vmem>>) attributes {dimension_semantics = [#tpu.dimension_semantics<parallel>], iteration_bounds = array<i64: 2>, scalar_prefetch = 0 : i64, scratch_operands = 0 : i64, tpu.core_type = #tpu.core_type<tc>, window_params = [{transform_indices = @transform_0, window_bounds = array<i64: 1, 4, 256>}, {pipeline_mode = #tpu.pipeline_mode<synchronous>, transform_indices = @transform_1, window_bounds = array<i64: 4, 72>}, {pipeline_mode = #tpu.pipeline_mode<synchronous>, transform_indices = @transform_2, window_bounds = array<i64: 4, 72>}, {pipeline_mode = #tpu.pipeline_mode<synchronous>, transform_indices = @transform_3, window_bounds = array<i64: 9, 256>}, {transform_indices = @transform_4, window_bounds = array<i64: 1, 4, 256>}]} {
    %c0 = arith.constant 0 : index
    %c0_0 = arith.constant 0 : index
    %c0_1 = arith.constant 0 : index
    %0 = vector.load %arg1[%c0, %c0_0, %c0_1] : memref<1x4x256xf32, #tpu.memory_space<vmem>>, vector<1x4x256xf32>
    %1 = vector.shape_cast %0 : vector<1x4x256xf32> to vector<4x256xf32>
    %c0_2 = arith.constant 0 : index
    %c0_3 = arith.constant 0 : index
    %2 = vector.load %arg4[%c0_2, %c0_3] : memref<9x256xf32, #tpu.memory_space<vmem>>, vector<9x256xf32>
    %cst = arith.constant 0.000000e+00 : f32
    %3 = vector.broadcast %cst : f32 to vector<4x256xf32>
    %4 = tpu.concatenate %1, %3 in 0 : vector<4x256xf32>, vector<4x256xf32> -> vector<8x256xf32>
    %c17_i32 = arith.constant 17 : i32
    %5 = tpu.dynamic_rotate %4 by %c17_i32 dim 1 : vector<8x256xf32>, i32 -> vector<8x256xf32>
    %6 = vector.extract_strided_slice %2 {offsets = [0, 0], sizes = [1, 256], strides = [1, 1]} : vector<9x256xf32> to vector<1x256xf32>
    %7 = vector.broadcast %6 : vector<1x256xf32> to vector<8x256xf32>
    %8 = arith.mulf %5, %7 : vector<8x256xf32>
    %c16_i32 = arith.constant 16 : i32
    %9 = tpu.dynamic_rotate %4 by %c16_i32 dim 1 : vector<8x256xf32>, i32 -> vector<8x256xf32>
    %10 = vector.extract_strided_slice %2 {offsets = [1, 0], sizes = [1, 256], strides = [1, 1]} : vector<9x256xf32> to vector<1x256xf32>
    %11 = vector.broadcast %10 : vector<1x256xf32> to vector<8x256xf32>
    %12 = arith.mulf %9, %11 : vector<8x256xf32>
    %c15_i32 = arith.constant 15 : i32
    %13 = tpu.dynamic_rotate %4 by %c15_i32 dim 1 : vector<8x256xf32>, i32 -> vector<8x256xf32>
    %14 = vector.extract_strided_slice %2 {offsets = [2, 0], sizes = [1, 256], strides = [1, 1]} : vector<9x256xf32> to vector<1x256xf32>
    %15 = vector.broadcast %14 : vector<1x256xf32> to vector<8x256xf32>
    %16 = arith.mulf %13, %15 : vector<8x256xf32>
    %c1_i32 = arith.constant 1 : i32
    %17 = tpu.dynamic_rotate %4 by %c1_i32 dim 1 : vector<8x256xf32>, i32 -> vector<8x256xf32>
    %18 = vector.extract_strided_slice %2 {offsets = [3, 0], sizes = [1, 256], strides = [1, 1]} : vector<9x256xf32> to vector<1x256xf32>
    %19 = vector.broadcast %18 : vector<1x256xf32> to vector<8x256xf32>
    %20 = arith.mulf %17, %19 : vector<8x256xf32>
    %21 = vector.extract_strided_slice %2 {offsets = [4, 0], sizes = [1, 256], strides = [1, 1]} : vector<9x256xf32> to vector<1x256xf32>
    %22 = vector.broadcast %21 : vector<1x256xf32> to vector<8x256xf32>
    %23 = arith.mulf %4, %22 : vector<8x256xf32>
    %c255_i32 = arith.constant 255 : i32
    %24 = tpu.dynamic_rotate %4 by %c255_i32 dim 1 : vector<8x256xf32>, i32 -> vector<8x256xf32>
    %25 = vector.extract_strided_slice %2 {offsets = [5, 0], sizes = [1, 256], strides = [1, 1]} : vector<9x256xf32> to vector<1x256xf32>
    %26 = vector.broadcast %25 : vector<1x256xf32> to vector<8x256xf32>
    %27 = arith.mulf %24, %26 : vector<8x256xf32>
    %c241_i32 = arith.constant 241 : i32
    %28 = tpu.dynamic_rotate %4 by %c241_i32 dim 1 : vector<8x256xf32>, i32 -> vector<8x256xf32>
    %29 = vector.extract_strided_slice %2 {offsets = [6, 0], sizes = [1, 256], strides = [1, 1]} : vector<9x256xf32> to vector<1x256xf32>
    %30 = vector.broadcast %29 : vector<1x256xf32> to vector<8x256xf32>
    %31 = arith.mulf %28, %30 : vector<8x256xf32>
    %c240_i32 = arith.constant 240 : i32
    %32 = tpu.dynamic_rotate %4 by %c240_i32 dim 1 : vector<8x256xf32>, i32 -> vector<8x256xf32>
    %33 = vector.extract_strided_slice %2 {offsets = [7, 0], sizes = [1, 256], strides = [1, 1]} : vector<9x256xf32> to vector<1x256xf32>
    %34 = vector.broadcast %33 : vector<1x256xf32> to vector<8x256xf32>
    %35 = arith.mulf %32, %34 : vector<8x256xf32>
    %c239_i32 = arith.constant 239 : i32
    %36 = tpu.dynamic_rotate %4 by %c239_i32 dim 1 : vector<8x256xf32>, i32 -> vector<8x256xf32>
    %37 = vector.extract_strided_slice %2 {offsets = [8, 0], sizes = [1, 256], strides = [1, 1]} : vector<9x256xf32> to vector<1x256xf32>
    %38 = vector.broadcast %37 : vector<1x256xf32> to vector<8x256xf32>
    %39 = arith.mulf %36, %38 : vector<8x256xf32>
    %40 = tpu.concatenate %8, %12, %16, %20, %23, %27, %31, %35, %39 in 0 : vector<8x256xf32>, vector<8x256xf32>, vector<8x256xf32>, vector<8x256xf32>, vector<8x256xf32>, vector<8x256xf32>, vector<8x256xf32>, vector<8x256xf32>, vector<8x256xf32> -> vector<72x256xf32>
    %41 = arith.truncf %40 : vector<72x256xf32> to vector<72x256xbf16>
    %c0_4 = arith.constant 0 : index
    %c0_5 = arith.constant 0 : index
    %42 = vector.load %arg2[%c0_4, %c0_5] : memref<4x72xbf16, #tpu.memory_space<vmem>>, vector<4x72xbf16>
    %cst_6 = arith.constant dense<0.000000e+00> : vector<4x256xf32>
    %43 = tpu.matmul %42, %41, %cst_6 {dimension_numbers = #tpu.dot_dimension_numbers<[1], [0], [0], [1], [0, 0, 1, 1], [], []>} : vector<4x72xbf16>, vector<72x256xbf16>, vector<4x256xf32> -> vector<4x256xf32>
    %cst_7 = arith.constant 0.000000e+00 : f32
    %44 = vector.broadcast %cst_7 : f32 to vector<4x256xf32>
    %45 = arith.maximumf %43, %44 : vector<4x256xf32>
    %46 = tpu.concatenate %45, %3 in 0 : vector<4x256xf32>, vector<4x256xf32> -> vector<8x256xf32>
    %c17_i32_8 = arith.constant 17 : i32
    %47 = tpu.dynamic_rotate %46 by %c17_i32_8 dim 1 : vector<8x256xf32>, i32 -> vector<8x256xf32>
    %48 = vector.extract_strided_slice %2 {offsets = [0, 0], sizes = [1, 256], strides = [1, 1]} : vector<9x256xf32> to vector<1x256xf32>
    %49 = vector.broadcast %48 : vector<1x256xf32> to vector<8x256xf32>
    %50 = arith.mulf %47, %49 : vector<8x256xf32>
    %c16_i32_9 = arith.constant 16 : i32
    %51 = tpu.dynamic_rotate %46 by %c16_i32_9 dim 1 : vector<8x256xf32>, i32 -> vector<8x256xf32>
    %52 = vector.extract_strided_slice %2 {offsets = [1, 0], sizes = [1, 256], strides = [1, 1]} : vector<9x256xf32> to vector<1x256xf32>
    %53 = vector.broadcast %52 : vector<1x256xf32> to vector<8x256xf32>
    %54 = arith.mulf %51, %53 : vector<8x256xf32>
    %c15_i32_10 = arith.constant 15 : i32
    %55 = tpu.dynamic_rotate %46 by %c15_i32_10 dim 1 : vector<8x256xf32>, i32 -> vector<8x256xf32>
    %56 = vector.extract_strided_slice %2 {offsets = [2, 0], sizes = [1, 256], strides = [1, 1]} : vector<9x256xf32> to vector<1x256xf32>
    %57 = vector.broadcast %56 : vector<1x256xf32> to vector<8x256xf32>
    %58 = arith.mulf %55, %57 : vector<8x256xf32>
    %c1_i32_11 = arith.constant 1 : i32
    %59 = tpu.dynamic_rotate %46 by %c1_i32_11 dim 1 : vector<8x256xf32>, i32 -> vector<8x256xf32>
    %60 = vector.extract_strided_slice %2 {offsets = [3, 0], sizes = [1, 256], strides = [1, 1]} : vector<9x256xf32> to vector<1x256xf32>
    %61 = vector.broadcast %60 : vector<1x256xf32> to vector<8x256xf32>
    %62 = arith.mulf %59, %61 : vector<8x256xf32>
    %63 = vector.extract_strided_slice %2 {offsets = [4, 0], sizes = [1, 256], strides = [1, 1]} : vector<9x256xf32> to vector<1x256xf32>
    %64 = vector.broadcast %63 : vector<1x256xf32> to vector<8x256xf32>
    %65 = arith.mulf %46, %64 : vector<8x256xf32>
    %c255_i32_12 = arith.constant 255 : i32
    %66 = tpu.dynamic_rotate %46 by %c255_i32_12 dim 1 : vector<8x256xf32>, i32 -> vector<8x256xf32>
    %67 = vector.extract_strided_slice %2 {offsets = [5, 0], sizes = [1, 256], strides = [1, 1]} : vector<9x256xf32> to vector<1x256xf32>
    %68 = vector.broadcast %67 : vector<1x256xf32> to vector<8x256xf32>
    %69 = arith.mulf %66, %68 : vector<8x256xf32>
    %c241_i32_13 = arith.constant 241 : i32
    %70 = tpu.dynamic_rotate %46 by %c241_i32_13 dim 1 : vector<8x256xf32>, i32 -> vector<8x256xf32>
    %71 = vector.extract_strided_slice %2 {offsets = [6, 0], sizes = [1, 256], strides = [1, 1]} : vector<9x256xf32> to vector<1x256xf32>
    %72 = vector.broadcast %71 : vector<1x256xf32> to vector<8x256xf32>
    %73 = arith.mulf %70, %72 : vector<8x256xf32>
    %c240_i32_14 = arith.constant 240 : i32
    %74 = tpu.dynamic_rotate %46 by %c240_i32_14 dim 1 : vector<8x256xf32>, i32 -> vector<8x256xf32>
    %75 = vector.extract_strided_slice %2 {offsets = [7, 0], sizes = [1, 256], strides = [1, 1]} : vector<9x256xf32> to vector<1x256xf32>
    %76 = vector.broadcast %75 : vector<1x256xf32> to vector<8x256xf32>
    %77 = arith.mulf %74, %76 : vector<8x256xf32>
    %c239_i32_15 = arith.constant 239 : i32
    %78 = tpu.dynamic_rotate %46 by %c239_i32_15 dim 1 : vector<8x256xf32>, i32 -> vector<8x256xf32>
    %79 = vector.extract_strided_slice %2 {offsets = [8, 0], sizes = [1, 256], strides = [1, 1]} : vector<9x256xf32> to vector<1x256xf32>
    %80 = vector.broadcast %79 : vector<1x256xf32> to vector<8x256xf32>
    %81 = arith.mulf %78, %80 : vector<8x256xf32>
    %82 = tpu.concatenate %50, %54, %58, %62, %65, %69, %73, %77, %81 in 0 : vector<8x256xf32>, vector<8x256xf32>, vector<8x256xf32>, vector<8x256xf32>, vector<8x256xf32>, vector<8x256xf32>, vector<8x256xf32>, vector<8x256xf32>, vector<8x256xf32> -> vector<72x256xf32>
    %83 = arith.truncf %82 : vector<72x256xf32> to vector<72x256xbf16>
    %c0_16 = arith.constant 0 : index
    %c0_17 = arith.constant 0 : index
    %84 = vector.load %arg3[%c0_16, %c0_17] : memref<4x72xbf16, #tpu.memory_space<vmem>>, vector<4x72xbf16>
    %cst_18 = arith.constant dense<0.000000e+00> : vector<4x256xf32>
    %85 = tpu.matmul %84, %83, %cst_18 {dimension_numbers = #tpu.dot_dimension_numbers<[1], [0], [0], [1], [0, 0, 1, 1], [], []>} : vector<4x72xbf16>, vector<72x256xbf16>, vector<4x256xf32> -> vector<4x256xf32>
    %86 = arith.addf %85, %1 : vector<4x256xf32>
    %cst_19 = arith.constant 0.000000e+00 : f32
    %87 = vector.broadcast %cst_19 : f32 to vector<4x256xf32>
    %88 = arith.maximumf %86, %87 : vector<4x256xf32>
    %c0_20 = arith.constant 0 : index
    %c0_21 = arith.constant 0 : index
    %c0_22 = arith.constant 0 : index
    %89 = vector.load %arg5[%c0_20, %c0_21, %c0_22] : memref<1x4x256xf32, #tpu.memory_space<vmem>>, vector<1x4x256xf32>
    %90 = vector.shape_cast %89 : vector<1x4x256xf32> to vector<4x256xf32>
    %91 = vector.shape_cast %88 : vector<4x256xf32> to vector<1x4x256xf32>
    tpu.vector_store %arg5[%c0_20, %c0_21, %c0_22], %91 {strides = array<i32>} : memref<1x4x256xf32, #tpu.memory_space<vmem>>, vector<1x4x256xf32>,
    return
  }
  func.func @transform_0(%arg0: i32) -> (i32, i32, i32) {
    %c0_i32 = arith.constant 0 : i32
    %c0_i32_0 = arith.constant 0 : i32
    %c0_i32_1 = arith.constant 0 : i32
    return %arg0, %c0_i32, %c0_i32_0 : i32, i32, i32
  }
  func.func @transform_1(%arg0: i32) -> (i32, i32) {
    %c0_i32 = arith.constant 0 : i32
    %c0_i32_0 = arith.constant 0 : i32
    %c0_i32_1 = arith.constant 0 : i32
    return %c0_i32, %c0_i32_0 : i32, i32
  }
  func.func @transform_2(%arg0: i32) -> (i32, i32) {
    %c0_i32 = arith.constant 0 : i32
    %c0_i32_0 = arith.constant 0 : i32
    %c0_i32_1 = arith.constant 0 : i32
    return %c0_i32, %c0_i32_0 : i32, i32
  }
  func.func @transform_3(%arg0: i32) -> (i32, i32) {
    %c0_i32 = arith.constant 0 : i32
    %c0_i32_0 = arith.constant 0 : i32
    %c0_i32_1 = arith.constant 0 : i32
    return %c0_i32, %c0_i32_0 : i32, i32
  }
  func.func @transform_4(%arg0: i32) -> (i32, i32, i32) {
    %c0_i32 = arith.constant 0 : i32
    %c0_i32_0 = arith.constant 0 : i32
    %c0_i32_1 = arith.constant 0 : i32
    return %arg0, %c0_i32, %c0_i32_0 : i32, i32, i32
  }
}

</mosaic_0001>

<llo_original>
// kernel: basic_block_34_forward.1
$region0: #{basic_block_34_forward.1}
  #allocation0 [shape = 'u32[]', space=smem, size = 0x4, offset = 0x4, fixed_abs, tag = 'smem constant byte address 0x4 - core index']
  #allocation1 [shape = 'u32[144,128]{1,0:T(1,128)}', space=vmem, size = 0x12000, scoped, tag = 'internal scratch']
  %s0 = inlined_call_operand.vmem [shape: f32[2,4,256], index: 0, kind: input, shape index: {}]
  %s1 = inlined_call_operand.vmem [shape: bf16[4,72], index: 1, kind: input, shape index: {}]
  %s2 = inlined_call_operand.vmem [shape: bf16[4,72], index: 2, kind: input, shape index: {}]
  %s3 = inlined_call_operand.vmem [shape: f32[9,256], index: 3, kind: input, shape index: {}]
  %s4 = inlined_call_operand.vmem [shape: f32[2,4,256], index: 4, kind: output, shape index: {}]
  %s5 = sld [smem:[#allocation0]]
  $region49: #{basic_block_34_forward.1} parent=0
    _
  %s7 = ssub.s32 1, %s5
  %s8 = scalar_select 0, %s7, %s5
  loop: start=0, step=1, limit=4
  $region2: #{basic_block_34_forward.1} parent=0 // loop_pre_header
    _
  $region3: #{basic_block_34_forward.1} parent=0 // loop_header
    %s10 = sphi 0, %s14
    %p11 = scmp.ge.s32.totalorder %s10, 4
    %s20 = sphi 0, %s22
    %s23 = sphi 0, %s20
    %s24 = sphi 0, %s23
    %s40 = sphi 0, %s24
    %s44 = sphi 0, %s44
    %s46 = sphi 0, %s44
    %s47 = sphi 0, %s46
    %s61 = sphi 0, %s47
    %s65 = sphi 0, %s65
    %s67 = sphi 0, %s65
    %s68 = sphi 0, %s67
    %s82 = sphi 0, %s68
    %s86 = sphi 0, %s86
    %s88 = sphi 0, %s86
    %s89 = sphi 0, %s88
    %s103 = sphi 0, %s89
    %s109 = sphi 0, %s111
    %s112 = sphi 0, %s109
    %s113 = sphi 0, %s112
    %s129 = sphi 0, %s113
  $region4: #{basic_block_34_forward.1} parent=0 // loop_header_branch
    %13 = sbr.rel (%p11) target = $region8
  $region5: #{basic_block_34_forward.1} parent=0 // loop_body
    %s15 = ssub.s32 %s10, 1
    %s16 = ssub.s32 %s10, 2
    %s17 = sadd.s32 %s10, 1
    %s18 = ssub.s32 %s10, %s17
    %p19 = scmp.eq.s32.totalorder %s18, 0
    %s21 = sadd.s32 %s20, 1
    %s22 = scalar_select %p19, %s20, %s21
    %p25 = pneg %p19
    %p26 = scmp.eq.s32.totalorder %s10, 1
    %p27 = por %p25, %p26
    %p28 = scmp.ne.s32.totalorder %s20, %s23
    %p29 = scmp.eq.s32.totalorder %s10, 0
    %p30 = por %p28, %p29
    %p31 = scmp.ne.s32.totalorder %s20, %s23
    %p32 = scmp.eq.s32.totalorder %s15, 1
    %p33 = por %p31, %p32
    %p34 = scmp.ne.s32.totalorder %s23, %s24
    %p35 = scmp.eq.s32.totalorder %s15, 0
    %p36 = por %p34, %p35
    %p37 = scmp.ne.s32.totalorder %s23, %s24
    %p38 = scmp.eq.s32.totalorder %s16, 1
    %p39 = por %p37, %p38
    %p41 = scmp.ne.s32.totalorder %s24, %s40
    %p42 = scmp.eq.s32.totalorder %s16, 0
    %p43 = por %p41, %p42
    %s45 = sadd.s32 %s44, 1
    %p48 = scmp.eq.s32.totalorder %s10, 1
    %p49 = scmp.ne.s32.totalorder %s44, %s46
    %p50 = scmp.eq.s32.totalorder %s10, 0
    %p51 = por %p49, %p50
    %p52 = scmp.ne.s32.totalorder %s44, %s46
    %p53 = scmp.eq.s32.totalorder %s15, 1
    %p54 = por %p52, %p53
    %p55 = scmp.ne.s32.totalorder %s46, %s47
    %p56 = scmp.eq.s32.totalorder %s15, 0
    %p57 = por %p55, %p56
    %p58 = scmp.ne.s32.totalorder %s46, %s47
    %p59 = scmp.eq.s32.totalorder %s16, 1
    %p60 = por %p58, %p59
    %p62 = scmp.ne.s32.totalorder %s47, %s61
    %p63 = scmp.eq.s32.totalorder %s16, 0
    %p64 = por %p62, %p63
    %s66 = sadd.s32 %s65, 1
    %p69 = scmp.eq.s32.totalorder %s10, 1
    %p70 = scmp.ne.s32.totalorder %s65, %s67
    %p71 = scmp.eq.s32.totalorder %s10, 0
    %p72 = por %p70, %p71
    %p73 = scmp.ne.s32.totalorder %s65, %s67
    %p74 = scmp.eq.s32.totalorder %s15, 1
    %p75 = por %p73, %p74
    %p76 = scmp.ne.s32.totalorder %s67, %s68
    %p77 = scmp.eq.s32.totalorder %s15, 0
    %p78 = por %p76, %p77
    %p79 = scmp.ne.s32.totalorder %s67, %s68
    %p80 = scmp.eq.s32.totalorder %s16, 1
    %p81 = por %p79, %p80
    %p83 = scmp.ne.s32.totalorder %s68, %s82
    %p84 = scmp.eq.s32.totalorder %s16, 0
    %p85 = por %p83, %p84
    %s87 = sadd.s32 %s86, 1
    %p90 = scmp.eq.s32.totalorder %s10, 1
    %p91 = scmp.ne.s32.totalorder %s86, %s88
    %p92 = scmp.eq.s32.totalorder %s10, 0
    %p93 = por %p91, %p92
    %p94 = scmp.ne.s32.totalorder %s86, %s88
    %p95 = scmp.eq.s32.totalorder %s15, 1
    %p96 = por %p94, %p95
    %p97 = scmp.ne.s32.totalorder %s88, %s89
    %p98 = scmp.eq.s32.totalorder %s15, 0
    %p99 = por %p97, %p98
    %p100 = scmp.ne.s32.totalorder %s88, %s89
    %p101 = scmp.eq.s32.totalorder %s16, 1
    %p102 = por %p100, %p101
    %p104 = scmp.ne.s32.totalorder %s89, %s103
    %p105 = scmp.eq.s32.totalorder %s16, 0
    %p106 = por %p104, %p105
    %s107 = ssub.s32 %s10, %s17
    %p108 = scmp.eq.s32.totalorder %s107, 0
    %s110 = sadd.s32 %s109, 1
    %s111 = scalar_select %p108, %s109, %s110
    %p114 = pneg %p108
    %p115 = scmp.eq.s32.totalorder %s10, 1
    %p116 = por %p114, %p115
    %p117 = scmp.ne.s32.totalorder %s109, %s112
    %p118 = scmp.eq.s32.totalorder %s10, 0
    %p119 = por %p117, %p118
    %p120 = scmp.ne.s32.totalorder %s109, %s112
    %p121 = scmp.eq.s32.totalorder %s15, 1
    %p122 = por %p120, %p121
    %p123 = scmp.ne.s32.totalorder %s112, %s113
    %p124 = scmp.eq.s32.totalorder %s15, 0
    %p125 = por %p123, %p124
    %p126 = scmp.ne.s32.totalorder %s112, %s113
    %p127 = scmp.eq.s32.totalorder %s16, 1
    %p128 = por %p126, %p127
    %p130 = scmp.ne.s32.totalorder %s113, %s129
    %p131 = scmp.eq.s32.totalorder %s16, 0
    %p132 = por %p130, %p131
    %p133 = scmp.le.s32.totalorder 1, %s10
    %p134 = scmp.lt.s32.totalorder %s10, 3
    %p135 = pnand %p133, %p134
    %p136 = pneg %p135
    // Predicated region
    $region9: #{basic_block_34_forward.1} parent=5 // pred_check
      _
    $region10: #{basic_block_34_forward.1} parent=5 // pred_check_branch
      %138 = sbr.rel (%p135) target = $region12
    $region11: #{basic_block_34_forward.1} parent=5 // pred_region
      %s139 = ssub.s32 %s10, 1
      // Predicated region
      $region13: #{basic_block_34_forward.1} parent=11 // pred_check
        %p140 = pneg %p57
      $region14: #{basic_block_34_forward.1} parent=11 // pred_check_branch
        %142 = sbr.rel (%p140) target = $region16
      $region15: #{basic_block_34_forward.1} parent=11 // pred_region
        _
      $region16: #{basic_block_34_forward.1} parent=11 // pred_fallthru
        _
      // Predicated region
      $region17: #{basic_block_34_forward.1} parent=11 // pred_check
        %p143 = pneg %p78
      $region18: #{basic_block_34_forward.1} parent=11 // pred_check_branch
        %145 = sbr.rel (%p143) target = $region20
      $region19: #{basic_block_34_forward.1} parent=11 // pred_region
        _
      $region20: #{basic_block_34_forward.1} parent=11 // pred_fallthru
        _
      // Predicated region
      $region21: #{basic_block_34_forward.1} parent=11 // pred_check
        %p146 = pneg %p99
      $region22: #{basic_block_34_forward.1} parent=11 // pred_check_branch
        %148 = sbr.rel (%p146) target = $region24
      $region23: #{basic_block_34_forward.1} parent=11 // pred_region
        _
      $region24: #{basic_block_34_forward.1} parent=11 // pred_fallthru
        _
    $region12: #{basic_block_34_forward.1} parent=5 // pred_fallthru
      _
    %p149 = scmp.lt.s32.totalorder %s10, 2
    // Predicated region
    $region25: #{basic_block_34_forward.1} parent=5 // pred_check
      %p150 = pneg %p149
    $region26: #{basic_block_34_forward.1} parent=5 // pred_check_branch
      %152 = sbr.rel (%p150) target = $region28
    $region27: #{basic_block_34_forward.1} parent=5 // pred_region
      // Predicated region
      $region29: #{basic_block_34_forward.1} parent=27 // pred_check
        %p153 = pneg %p30
      $region30: #{basic_block_34_forward.1} parent=27 // pred_check_branch
        %155 = sbr.rel (%p153) target = $region32
      $region31: #{basic_block_34_forward.1} parent=27 // pred_region
        %p156 = scmp.lt.s32.totalorder %s10, 1
        %s157 = scalar_select %p156, %s10, 1
        %s158 = smul.addr %s157, 2
        %s159 = smul.addr %s158, 4
        %s160 = scalar_lea.vmem %s0, %s159
      $region32: #{basic_block_34_forward.1} parent=27 // pred_fallthru
        _
    $region28: #{basic_block_34_forward.1} parent=5 // pred_fallthru
      _
    %p161 = scmp.le.s32.totalorder 1, %s10
    %p162 = scmp.lt.s32.totalorder %s10, 3
    %p163 = pnand %p161, %p162
    %p164 = pneg %p163
    // Predicated region
    $region33: #{basic_block_34_forward.1} parent=5 // pred_check
      _
    $region34: #{basic_block_34_forward.1} parent=5 // pred_check_branch
      %166 = sbr.rel (%p163) target = $region36
    $region35: #{basic_block_34_forward.1} parent=5 // pred_region
      %s167 = ssub.s32 %s10, 1
      %p168 = scmp.lt.s32.totalorder %s15, 1
      %s169 = scalar_select %p168, %s15, 1
      %s170 = smul.addr %s169, 2
      %s171 = smul.addr %s170, 4
      %s172 = scalar_lea.vmem %s0, %s171
      %p173 = pneg %p36
      %p174 = pneg %p33
      %p175 = pneg %p57
      %p176 = pneg %p54
      %p177 = pneg %p78
      %p178 = pneg %p75
      %p179 = pneg %p99
      %p180 = pneg %p96
      %p181 = pneg %p125
      %p182 = pneg %p122
      %p183 = scmp.lt.s32.totalorder %s15, 1
      %s184 = scalar_select %p183, %s15, 1
      %s185 = smul.addr %s184, 2
      %s186 = smul.addr %s185, 4
      %s187 = scalar_lea.vmem %s4, %s186
      %p188 = scmp.lt.s32.totalorder %s15, 1
      %s189 = scalar_select %p188, %s15, 1
      %s190 = smul.addr %s189, 2
      %s191 = smul.addr %s190, 4
      %s192 = scalar_lea.vmem %s0, %s191
      %p193 = scmp.lt.s32.totalorder %s15, 1
      %s194 = scalar_select %p193, %s15, 1
      %s195 = smul.addr %s194, 2
      %s196 = smul.addr %s195, 4
      %s197 = scalar_lea.vmem %s4, %s196
      %v199 = vld [vmem:[%s192] sm:$0xff]
      %v200 = vld [vmem:[%s3] sm:$0xff]
      %v201 = vld [vmem:[%s3 + $0x8] sm:$0xff]
      %v202 = vld [vmem:[%s3 + $0x10] sm:$0x1]
      %v203 = vld [vmem:[%s3 + $0x18] sm:$0x1]
      %v205 = vcombine.high %v199, %v199
      %vm207 = vcmask 1043456
      %v208 = vsel %vm207, %v199, 0.0
      %v209 = vsel %vm207, %v205, 0.0
      %210 = vrot.lane.b32.xlu0 %v208, 17
      %v211 = vpop.permute.xlu0 %210
      %212 = vrot.lane.b32.xlu0 %v209, 17
      %v213 = vpop.permute.xlu0 %212
      %v214 = vlaneseq
      %v215 = vand.u32 %v214, 127
      %vm216 = vcmp.lt.s32.totalorder %v215, 17
      %v217 = vsel %vm216, %v211, %v213
      %v218 = vsel %vm216, %v213, %v211
      %v219 = vlaneseq
      %v220 = vshrl.u32 %v219, 7
      %v221 = vsub.s32 0, %v220
      %v222 = vrot.slane %v200, %v221
      %v223 = vlaneseq
      %v224 = vshrl.u32 %v223, 7
      %v225 = vsub.s32 0, %v224
      %v226 = vrot.slane %v201, %v225
      %v227 = vmul.f32 %v218, %v222
      %v228 = vmul.f32 %v217, %v226
      %229 = vrot.lane.b32.xlu0 %v208, 16
      %v230 = vpop.permute.xlu0 %229
      %231 = vrot.lane.b32.xlu0 %v209, 16
      %v232 = vpop.permute.xlu0 %231
      %vm233 = vcmp.lt.s32.totalorder %v215, 16
      %v234 = vsel %vm233, %v230, %v232
      %v235 = vsel %vm233, %v232, %v230
      %v236 = vlaneseq
      %v237 = vshrl.u32 %v236, 7
      %v238 = vsub.s32 1, %v237
      %v239 = vrot.slane %v200, %v238
      %v240 = vlaneseq
      %v241 = vshrl.u32 %v240, 7
      %v242 = vsub.s32 1, %v241
      %v243 = vrot.slane %v201, %v242
      %v244 = vmul.f32 %v235, %v239
      %v245 = vmul.f32 %v234, %v243
      %246 = vrot.lane.b32.xlu0 %v208, 15
      %v247 = vpop.permute.xlu0 %246
      %248 = vrot.lane.b32.xlu0 %v209, 15
      %v249 = vpop.permute.xlu0 %248
      %vm250 = vcmp.lt.s32.totalorder %v215, 15
      %v251 = vsel %vm250, %v247, %v249
      %v252 = vsel %vm250, %v249, %v247
      %v253 = vlaneseq
      %v254 = vshrl.u32 %v253, 7
      %v255 = vsub.s32 2, %v254
      %v256 = vrot.slane %v200, %v255
      %v257 = vlaneseq
      %v258 = vshrl.u32 %v257, 7
      %v259 = vsub.s32 2, %v258
      %v260 = vrot.slane %v201, %v259
      %v261 = vmul.f32 %v252, %v256
      %v262 = vmul.f32 %v251, %v260
      %263 = vrot.lane.b32.xlu0 %v208, 1
      %v264 = vpop.permute.xlu0 %263
      %265 = vrot.lane.b32.xlu0 %v209, 1
      %v266 = vpop.permute.xlu0 %265
      %vm267 = vcmp.lt.s32.totalorder %v215, 1
      %v268 = vsel %vm267, %v264, %v266
      %v269 = vsel %vm267, %v266, %v264
      %v270 = vlaneseq
      %v271 = vshrl.u32 %v270, 7
      %v272 = vsub.s32 3, %v271
      %v273 = vrot.slane %v200, %v272
      %v274 = vlaneseq
      %v275 = vshrl.u32 %v274, 7
      %v276 = vsub.s32 3, %v275
      %v277 = vrot.slane %v201, %v276
      %v278 = vmul.f32 %v269, %v273
      %v279 = vmul.f32 %v268, %v277
      %v280 = vlaneseq
      %v281 = vshrl.u32 %v280, 7
      %v282 = vsub.s32 4, %v281
      %v283 = vrot.slane %v200, %v282
      %v284 = vlaneseq
      %v285 = vshrl.u32 %v284, 7
      %v286 = vsub.s32 4, %v285
      %v287 = vrot.slane %v201, %v286
      %v288 = vmul.f32 %v208, %v283
      %v289 = vmul.f32 %v209, %v287
      %290 = vrot.lane.b32.xlu0 %v208, 127
      %v291 = vpop.permute.xlu0 %290
      %292 = vrot.lane.b32.xlu0 %v209, 127
      %v293 = vpop.permute.xlu0 %292
      %vm294 = vcmp.lt.s32.totalorder %v215, 127
      %v295 = vsel %vm294, %v291, %v293
      %v296 = vsel %vm294, %v293, %v291
      %v297 = vlaneseq
      %v298 = vshrl.u32 %v297, 7
      %v299 = vsub.s32 5, %v298
      %v300 = vrot.slane %v200, %v299
      %v301 = vlaneseq
      %v302 = vshrl.u32 %v301, 7
      %v303 = vsub.s32 5, %v302
      %v304 = vrot.slane %v201, %v303
      %v305 = vmul.f32 %v295, %v300
      %v306 = vmul.f32 %v296, %v304
      %307 = vrot.lane.b32.xlu0 %v208, 113
      %v308 = vpop.permute.xlu0 %307
      %309 = vrot.lane.b32.xlu0 %v209, 113
      %v310 = vpop.permute.xlu0 %309
      %vm311 = vcmp.lt.s32.totalorder %v215, 113
      %v312 = vsel %vm311, %v308, %v310
      %v313 = vsel %vm311, %v310, %v308
      %v314 = vlaneseq
      %v315 = vshrl.u32 %v314, 7
      %v316 = vsub.s32 6, %v315
      %v317 = vrot.slane %v200, %v316
      %v318 = vlaneseq
      %v319 = vshrl.u32 %v318, 7
      %v320 = vsub.s32 6, %v319
      %v321 = vrot.slane %v201, %v320
      %v322 = vmul.f32 %v312, %v317
      %v323 = vmul.f32 %v313, %v321
      %324 = vrot.lane.b32.xlu0 %v208, 112
      %v325 = vpop.permute.xlu0 %324
      %326 = vrot.lane.b32.xlu0 %v209, 112
      %v327 = vpop.permute.xlu0 %326
      %vm328 = vcmp.lt.s32.totalorder %v215, 112
      %v329 = vsel %vm328, %v325, %v327
      %v330 = vsel %vm328, %v327, %v325
      %v331 = vlaneseq
      %v332 = vshrl.u32 %v331, 7
      %v333 = vsub.s32 7, %v332
      %v334 = vrot.slane %v200, %v333
      %v335 = vlaneseq
      %v336 = vshrl.u32 %v335, 7
      %v337 = vsub.s32 7, %v336
      %v338 = vrot.slane %v201, %v337
      %v339 = vmul.f32 %v329, %v334
      %v340 = vmul.f32 %v330, %v338
      %341 = vrot.lane.b32.xlu0 %v208, 111
      %v342 = vpop.permute.xlu0 %341
      %343 = vrot.lane.b32.xlu0 %v209, 111
      %v344 = vpop.permute.xlu0 %343
      %vm345 = vcmp.lt.s32.totalorder %v215, 111
      %v346 = vsel %vm345, %v342, %v344
      %v347 = vsel %vm345, %v344, %v342
      %v348 = vlaneseq
      %v349 = vshrl.u32 %v348, 7
      %v350 = vsub.s32 0, %v349
      %v351 = vrot.slane %v202, %v350
      %v352 = vlaneseq
      %v353 = vshrl.u32 %v352, 7
      %v354 = vsub.s32 0, %v353
      %v355 = vrot.slane %v203, %v354
      %v356 = vmul.f32 %v346, %v351
      %v357 = vmul.f32 %v347, %v355
      %v358 = vpack.c.bf16 %v244, %v227
      %v359 = vpack.c.bf16 %v245, %v228
      %v360 = vpack.c.bf16 %v278, %v261
      %v361 = vpack.c.bf16 %v279, %v262
      %v362 = vpack.c.bf16 %v305, %v288
      %v363 = vpack.c.bf16 %v306, %v289
      %v364 = vpack.c.bf16 %v339, %v322
      %v365 = vpack.c.bf16 %v340, %v323
      %v366 = vpack.c.bf16 %v356, %v356
      %v367 = vpack.c.bf16 %v357, %v357
      %v368 = vld [vmem:[%s1] sm:$0x3]
      %vm369 = vcmask 588800
      %v371 = vsel %vm369, %v368, 0
      %v374 = vsel %vm207, %v366, 0
      %v377 = vsel %vm207, %v367, 0
      %379 = vmatprep.subr.bf16.mxu0 %v359
      %380 = vmatpush1.bf16.msra.mxu0 %v358
      %381 = vmatprep.subr.bf16.mxu0 %v361
      %382 = vmatpush1.bf16.msra.mxu0 %v360
      %383 = vmatprep.subr.bf16.mxu0 %v363
      %384 = vmatpush1.bf16.msra.mxu0 %v362
      %385 = vmatprep.subr.bf16.mxu0 %v365
      %386 = vmatpush1.bf16.msra.mxu0 %v364
      %387 = vmatprep.subr.bf16.mxu0 %v377
      %388 = vmatpush1.bf16.msra.mxu0 %v374
      %389 = vmatprep.subr.bf16.mxu0 0
      %390 = vmatpush1.bf16.msra.mxu0 0
      %391 = vmatprep.subr.bf16.mxu0 0
      %392 = vmatpush1.bf16.msra.mxu0 0
      %393 = vmatprep.subr.bf16.mxu0 0
      %394 = vmatpush1.bf16.msra.mxu0 0
      %395 = vmatprep.subr.bf16.mxu0 0
      %396 = vmatpush1.bf16.msra.mxu0 0
      %397 = vmatprep.subr.bf16.mxu0 0
      %398 = vmatpush1.bf16.msra.mxu0 0
      %399 = vmatprep.subr.bf16.mxu0 0
      %400 = vmatpush1.bf16.msra.mxu0 0
      %401 = vmatprep.subr.bf16.mxu0 0
      %402 = vmatpush1.bf16.msra.mxu0 0
      %403 = vmatprep.subr.bf16.mxu0 0
      %404 = vmatpush1.bf16.msra.mxu0 0
      %405 = vmatprep.subr.bf16.mxu0 0
      %406 = vmatpush1.bf16.msra.mxu0 0
      %407 = vmatprep.subr.bf16.mxu0 0
      %408 = vmatpush1.bf16.msra.mxu0 0
      %409 = vmatprep.subr.bf16.mxu0 0
      %410 = vmatpush1.bf16.msra.mxu0 0
      %411 = vmatprep.mubr.bf16.mxu0 0
      %412 = vmatmul.mubr.bf16.gmra.mrb[0].mxu0 %v371
      %v413 = vpop.f32.mrb[0].mxu0
      %v414 = vadd.f32 0.0, %v413
      %v415 = vpop.f32.mrb[0].mxu0
      %v416 = vadd.f32 0.0, %v415
      %v417 = vpop.f32.mrb[0].mxu0
      %v418 = vpop.f32.mrb[0].mxu0
      %419 = vdwg.mxu0
      %v420 = vmax.f32 %v414, 0.0
      %v421 = vmax.f32 %v416, 0.0
      %v422 = vsel %vm207, %v420, 0.0
      %v423 = vsel %vm207, %v421, 0.0
      %424 = vrot.lane.b32.xlu0 %v422, 17
      %v425 = vpop.permute.xlu0 %424
      %426 = vrot.lane.b32.xlu0 %v423, 17
      %v427 = vpop.permute.xlu0 %426
      %v428 = vsel %vm216, %v425, %v427
      %v429 = vsel %vm216, %v427, %v425
      %v430 = vmul.f32 %v429, %v222
      %v431 = vmul.f32 %v428, %v226
      %432 = vrot.lane.b32.xlu0 %v422, 16
      %v433 = vpop.permute.xlu0 %432
      %434 = vrot.lane.b32.xlu0 %v423, 16
      %v435 = vpop.permute.xlu0 %434
      %v436 = vsel %vm233, %v433, %v435
      %v437 = vsel %vm233, %v435, %v433
      %v438 = vmul.f32 %v437, %v239
      %v439 = vmul.f32 %v436, %v243
      %440 = vrot.lane.b32.xlu0 %v422, 15
      %v441 = vpop.permute.xlu0 %440
      %442 = vrot.lane.b32.xlu0 %v423, 15
      %v443 = vpop.permute.xlu0 %442
      %v444 = vsel %vm250, %v441, %v443
      %v445 = vsel %vm250, %v443, %v441
      %v446 = vmul.f32 %v445, %v256
      %v447 = vmul.f32 %v444, %v260
      %448 = vrot.lane.b32.xlu0 %v422, 1
      %v449 = vpop.permute.xlu0 %448
      %450 = vrot.lane.b32.xlu0 %v423, 1
      %v451 = vpop.permute.xlu0 %450
      %v452 = vsel %vm267, %v449, %v451
      %v453 = vsel %vm267, %v451, %v449
      %v454 = vmul.f32 %v453, %v273
      %v455 = vmul.f32 %v452, %v277
      %v456 = vmul.f32 %v422, %v283
      %v457 = vmul.f32 %v423, %v287
      %458 = vrot.lane.b32.xlu0 %v422, 127
      %v459 = vpop.permute.xlu0 %458
      %460 = vrot.lane.b32.xlu0 %v423, 127
      %v461 = vpop.permute.xlu0 %460
      %v462 = vsel %vm294, %v459, %v461
      %v463 = vsel %vm294, %v461, %v459
      %v464 = vmul.f32 %v462, %v300
      %v465 = vmul.f32 %v463, %v304
      %466 = vrot.lane.b32.xlu0 %v422, 113
      %v467 = vpop.permute.xlu0 %466
      %468 = vrot.lane.b32.xlu0 %v423, 113
      %v469 = vpop.permute.xlu0 %468
      %v470 = vsel %vm311, %v467, %v469
      %v471 = vsel %vm311, %v469, %v467
      %v472 = vmul.f32 %v470, %v317
      %v473 = vmul.f32 %v471, %v321
      %474 = vrot.lane.b32.xlu0 %v422, 112
      %v475 = vpop.permute.xlu0 %474
      %476 = vrot.lane.b32.xlu0 %v423, 112
      %v477 = vpop.permute.xlu0 %476
      %v478 = vsel %vm328, %v475, %v477
      %v479 = vsel %vm328, %v477, %v475
      %v480 = vmul.f32 %v478, %v334
      %v481 = vmul.f32 %v479, %v338
      %482 = vrot.lane.b32.xlu0 %v422, 111
      %v483 = vpop.permute.xlu0 %482
      %484 = vrot.lane.b32.xlu0 %v423, 111
      %v485 = vpop.permute.xlu0 %484
      %v486 = vsel %vm345, %v483, %v485
      %v487 = vsel %vm345, %v485, %v483
      %v488 = vmul.f32 %v486, %v351
      %v489 = vmul.f32 %v487, %v355
      %v490 = vpack.c.bf16 %v438, %v430
      %v491 = vpack.c.bf16 %v439, %v431
      %v492 = vpack.c.bf16 %v454, %v446
      %v493 = vpack.c.bf16 %v455, %v447
      %v494 = vpack.c.bf16 %v464, %v456
      %v495 = vpack.c.bf16 %v465, %v457
      %v496 = vpack.c.bf16 %v480, %v472
      %v497 = vpack.c.bf16 %v481, %v473
      %v498 = vpack.c.bf16 %v488, %v488
      %v499 = vpack.c.bf16 %v489, %v489
      %v500 = vld [vmem:[%s2] sm:$0x3]
      %v502 = vsel %vm369, %v500, 0
      %v505 = vsel %vm207, %v498, 0
      %v508 = vsel %vm207, %v499, 0
      %510 = vmatprep.subr.bf16.mxu0 %v491
      %511 = vmatpush1.bf16.msra.mxu0 %v490
      %512 = vmatprep.subr.bf16.mxu0 %v493
      %513 = vmatpush1.bf16.msra.mxu0 %v492
      %514 = vmatprep.subr.bf16.mxu0 %v495
      %515 = vmatpush1.bf16.msra.mxu0 %v494
      %516 = vmatprep.subr.bf16.mxu0 %v497
      %517 = vmatpush1.bf16.msra.mxu0 %v496
      %518 = vmatprep.subr.bf16.mxu0 %v508
      %519 = vmatpush1.bf16.msra.mxu0 %v505
      %520 = vmatprep.subr.bf16.mxu0 0
      %521 = vmatpush1.bf16.msra.mxu0 0
      %522 = vmatprep.subr.bf16.mxu0 0
      %523 = vmatpush1.bf16.msra.mxu0 0
      %524 = vmatprep.subr.bf16.mxu0 0
      %525 = vmatpush1.bf16.msra.mxu0 0
      %526 = vmatprep.subr.bf16.mxu0 0
      %527 = vmatpush1.bf16.msra.mxu0 0
      %528 = vmatprep.subr.bf16.mxu0 0
      %529 = vmatpush1.bf16.msra.mxu0 0
      %530 = vmatprep.subr.bf16.mxu0 0
      %531 = vmatpush1.bf16.msra.mxu0 0
      %532 = vmatprep.subr.bf16.mxu0 0
      %533 = vmatpush1.bf16.msra.mxu0 0
      %534 = vmatprep.subr.bf16.mxu0 0
      %535 = vmatpush1.bf16.msra.mxu0 0
      %536 = vmatprep.subr.bf16.mxu0 0
      %537 = vmatpush1.bf16.msra.mxu0 0
      %538 = vmatprep.subr.bf16.mxu0 0
      %539 = vmatpush1.bf16.msra.mxu0 0
      %540 = vmatprep.subr.bf16.mxu0 0
      %541 = vmatpush1.bf16.msra.mxu0 0
      %542 = vmatprep.mubr.bf16.mxu0 0
      %543 = vmatmul.mubr.bf16.gmra.mrb[0].mxu0 %v502
      %v544 = vpop.f32.mrb[0].mxu0
      %v545 = vadd.f32 %v199, %v544
      %v546 = vpop.f32.mrb[0].mxu0
      %v547 = vadd.f32 %v205, %v546
      %v548 = vpop.f32.mrb[0].mxu0
      %v549 = vpop.f32.mrb[0].mxu0
      %550 = vdwg.mxu0
      %v551 = vmax.f32 %v545, 0.0
      %v552 = vmax.f32 %v547, 0.0
      %v555 = vcombine.low %v551, %v552
      %557 = vst [vmem:[%s197] sm:$0xff] %v555
      %p558 = scmp.lt.s32.totalorder %s15, 1
      %s559 = scalar_select %p558, %s15, 1
      %s560 = smul.addr %s559, 2
      %s561 = smul.addr %s560, 4
      %s562 = scalar_lea.vmem %s4, %s561
      // Predicated region
      $region37: #{basic_block_34_forward.1} parent=35 // pred_check
        %p563 = pneg %p122
      $region38: #{basic_block_34_forward.1} parent=35 // pred_check_branch
        %565 = sbr.rel (%p563) target = $region40
      $region39: #{basic_block_34_forward.1} parent=35 // pred_region
        _
      $region40: #{basic_block_34_forward.1} parent=35 // pred_fallthru
        _
    $region36: #{basic_block_34_forward.1} parent=5 // pred_fallthru
      _
    %p566 = scmp.le.s32.totalorder 2, %s10
    // Predicated region
    $region41: #{basic_block_34_forward.1} parent=5 // pred_check
      %p567 = pneg %p566
    $region42: #{basic_block_34_forward.1} parent=5 // pred_check_branch
      %569 = sbr.rel (%p567) target = $region44
    $region43: #{basic_block_34_forward.1} parent=5 // pred_region
      %s570 = ssub.s32 %s10, 2
      // Predicated region
      $region45: #{basic_block_34_forward.1} parent=43 // pred_check
        %p571 = pneg %p128
      $region46: #{basic_block_34_forward.1} parent=43 // pred_check_branch
        %573 = sbr.rel (%p571) target = $region48
      $region47: #{basic_block_34_forward.1} parent=43 // pred_region
        %p574 = scmp.lt.s32.totalorder %s16, 1
        %s575 = scalar_select %p574, %s16, 1
        %s576 = smul.addr %s575, 2
        %s577 = smul.addr %s576, 4
        %s578 = scalar_lea.vmem %s4, %s577
      $region48: #{basic_block_34_forward.1} parent=43 // pred_fallthru
        _
    $region44: #{basic_block_34_forward.1} parent=5 // pred_fallthru
      _
  $region6: #{basic_block_34_forward.1} parent=0 // loop_footer
    %s14 = sadd.s32 1, %s10
  $region7: #{basic_block_34_forward.1} parent=0 // loop_footer_branch
    %9 = sbr.rel target = $region3
  $region8: #{basic_block_34_forward.1} parent=0 // loop_exit
    _

</llo_original>
